<compile_context>
chip_gen: v7x
topology: tpu7x:2x2x1
jax: 0.10.0
libtpu: 0.0.40
codegen_flags: <defaults>
</compile_context>

<pallas_src>
import functools

import jax
import jax.numpy as jnp
import numpy as np
from jax.experimental import pallas as pl
from jax.experimental.pallas import tpu as pltpu

GLOVE_DIM = 100
HIDDEN = 64
D_PAD = 128          # GLOVE_DIM zero-padded to a full lane vreg / clean MXU K feed
T_TILE = 32          # timesteps per grid step (amortizes per-step pipeline overhead)
B_CHUNK_MAX = 256    # MXU row width on v6e/v7x (128-row chunks still fill v5e's MXU)


def _round8(n):
    return (n + 7) // 8 * 8


def _pick_b_chunk(batch):
    """Batch rows per grid step: fill the MXU M-dim, but keep >=2 chunks (v7x
    megacore) once the batch is large enough that each chunk still has >=128 rows."""
    b8 = _round8(batch)
    if b8 <= B_CHUNK_MAX:
        return b8
    half = _round8((b8 + 1) // 2)
    return min(B_CHUNK_MAX, half)


def gru_head_kernel(x_ref,      # (t_tile, B_CHUNK, D_PAD) bf16, time-major
                    wi_ref,     # (D_PAD, 3H) bf16   fused [Wir|Wiz|Win], zero-padded K
                    wh_ref,     # (H, 3H)     bf16   fused [Whr|Whz|Whn]
                    bi_ref,     # (1, 3H)     f32    [b_ir+b_hr | b_iz+b_hz | b_in]
                    bhn_ref,    # (1, H)      f32    b_hn (must stay inside r * (.))
                    wlin_ref,   # (1, H)      f32
                    blin_ref,   # (1, 1)      f32
                    out_ref,    # (B_CHUNK, 1) f32
                    h_ref,      # scratch (B_CHUNK, H) f32, carried across time tiles
                    *, seq_len):
    k = pl.program_id(1)
    n_k = pl.num_programs(1)
    t_tile, bc, d = x_ref.shape
    h_dim = wh_ref.shape[0]

    @pl.when(k == 0)
    def _init():
        h_ref[...] = jnp.zeros_like(h_ref)

    # --- Stage 1: ONE big input-projection matmul for the whole time tile (bf16 MXU, f32 acc).
    x2d = x_ref[...].reshape(t_tile * bc, d)
    xp = jnp.dot(x2d, wi_ref[...], preferred_element_type=jnp.float32)
    xp = xp.reshape(t_tile, bc, 3 * h_dim)     # time-major -> xp[t] is a dense (bc, 3H) block

    # Hoisted bias broadcasts (JAX does not CSE broadcast_in_dim).
    bi = jnp.broadcast_to(bi_ref[...], (bc, 3 * h_dim))
    bhn = jnp.broadcast_to(bhn_ref[...], (bc, h_dim))
    whh = wh_ref[...]                          # bf16 (H, 3H)

    # --- Stage 2: serial recurrence, fully unrolled; one fused bf16 hidden matmul per step.
    def step(h, t, masked):
        gx = xp[t] + bi                                                       # (bc, 3H) f32
        gh = jnp.dot(h.astype(jnp.bfloat16), whh,
                     preferred_element_type=jnp.float32)                      # (bc, 3H) f32
        # r and z share one 128-lane sigmoid
        rz = jax.nn.sigmoid(gx[:, :2 * h_dim] + gh[:, :2 * h_dim])
        r = rz[:, :h_dim]
        z = rz[:, h_dim:]
        n = jnp.tanh(gx[:, 2 * h_dim:] + r * (gh[:, 2 * h_dim:] + bhn))
        h_new = n + z * (h - n)                                               # == (1-z)*n + z*h
        if masked:
            # ragged last tile: padded timesteps must not update h (select, not arithmetic,
            # so OOB garbage never contaminates the state)
            valid = (k * t_tile + t) < seq_len
            h_new = jnp.where(valid, h_new, h)
        return h_new

    def run(masked):
        h = h_ref[...]
        for t in range(t_tile):                # static unroll
            h = step(h, t, masked)
        h_ref[...] = h

    if seq_len % t_tile == 0:
        run(False)
    else:
        # only the ragged last time tile pays the per-step select
        @pl.when(k < n_k - 1)
        def _full():
            run(False)

        @pl.when(k == n_k - 1)
        def _ragged():
            run(True)

    @pl.when(k == n_k - 1)
    def _finalize():
        # Linear(H,1) + Sigmoid as a VPU multiply + lane reduce (avoid an N=1 MXU matmul).
        h = h_ref[...]
        logits = jnp.sum(h * wlin_ref[...], axis=-1, keepdims=True) + blin_ref[...]
        out_ref[...] = jax.nn.sigmoid(logits)


def rnn_forward(x, params, *, t_tile=None, b_chunk=None):
    """x: (B, T, GLOVE_DIM) float32 (batch_first).  Returns (B, 1) float32."""
    B, T, D = x.shape
    H = params["wh"].shape[0]
    d_pad = params["wi"].shape[0]
    assert D <= d_pad

    if t_tile is None:
        t_tile = T_TILE
    t_tile = min(t_tile, T)
    if b_chunk is None:
        b_chunk = _pick_b_chunk(B)
    b_pad = pl.cdiv(B, b_chunk) * b_chunk

    # Pad batch (sublane fill) and feature dim (lane/MXU-K alignment) with zeros,
    # transpose to time-major once in the wrapper, and stream x as bf16.
    xb = x
    if b_pad != B or d_pad != D:
        xb = jnp.pad(xb, ((0, b_pad - B), (0, 0), (0, d_pad - D)))
    xb = jnp.transpose(xb, (1, 0, 2)).astype(jnp.bfloat16)      # (T, b_pad, d_pad)

    grid = (b_pad // b_chunk, pl.cdiv(T, t_tile))
    kernel = functools.partial(gru_head_kernel, seq_len=T)

    out = pl.pallas_call(
        kernel,
        out_shape=jax.ShapeDtypeStruct((b_pad, 1), jnp.float32),
        grid_spec=pltpu.PrefetchScalarGridSpec(
            num_scalar_prefetch=0,
            grid=grid,
            in_specs=[
                pl.BlockSpec((t_tile, b_chunk, d_pad), lambda i, k: (k, i, 0)),  # x, time-major
                pl.BlockSpec((d_pad, 3 * H), lambda i, k: (0, 0)),               # weights resident
                pl.BlockSpec((H, 3 * H), lambda i, k: (0, 0)),
                pl.BlockSpec((1, 3 * H), lambda i, k: (0, 0)),
                pl.BlockSpec((1, H), lambda i, k: (0, 0)),
                pl.BlockSpec((1, H), lambda i, k: (0, 0)),
                pl.BlockSpec((1, 1), lambda i, k: (0, 0)),
            ],
            out_specs=pl.BlockSpec((b_chunk, 1), lambda i, k: (i, 0)),
            scratch_shapes=[pltpu.VMEM((b_chunk, H), jnp.float32)],
        ),
        compiler_params=pltpu.CompilerParams(
            dimension_semantics=("parallel", "arbitrary"),
            vmem_limit_bytes=48 * 1024 * 1024),
    )(xb, params["wi"], params["wh"], params["bi"], params["bhn"],
      params["wlin"], params["blin"])
    return out[:B]


def make_params(key, hidden=HIDDEN, dim=GLOVE_DIM, d_pad=D_PAD):
    """Synthetic params matching nn.GRU(GLOVE_DIM, H, 1, batch_first=True) + nn.Linear(H, 1)."""
    ks = jax.random.split(key, 6)
    bound = 1.0 / np.sqrt(hidden)

    def u(k, shape):
        return jax.random.uniform(k, shape, jnp.float32, -bound, bound)

    H = hidden
    w_ih = u(ks[0], (3 * H, dim))   # PyTorch layout: rows = [r | z | n]
    w_hh = u(ks[1], (3 * H, H))
    b_ih = u(ks[2], (3 * H,))
    b_hh = u(ks[3], (3 * H,))
    w_lin = u(ks[4], (1, H))
    b_lin = u(ks[5], (1,))

    wi = jnp.transpose(w_ih)                        # (D, 3H) f32
    wh = jnp.transpose(w_hh)                        # (H, 3H) f32
    bi = jnp.concatenate([
        b_ih[0 * H:1 * H] + b_hh[0 * H:1 * H],      # r: b_ir + b_hr fuse
        b_ih[1 * H:2 * H] + b_hh[1 * H:2 * H],      # z: b_iz + b_hz fuse
        b_ih[2 * H:3 * H],                          # n: b_in only (b_hn is gated by r)
    ]).reshape(1, 3 * H)
    bhn = b_hh[2 * H:3 * H].reshape(1, H)

    wi_pad = jnp.pad(wi, ((0, d_pad - dim), (0, 0)))   # zero-pad contraction dim to 128

    return {
        "wi": wi_pad.astype(jnp.bfloat16),           # (D_PAD, 3H) bf16 MXU operand
        "wh": wh.astype(jnp.bfloat16),               # (H, 3H)     bf16 MXU operand
        "bi": bi,                                    # (1, 3H) f32
        "bhn": bhn,                                  # (1, H)  f32
        "wlin": w_lin,                               # (1, H)  f32
        "blin": b_lin.reshape(1, 1),                 # (1, 1)  f32
        # full-precision copies for the pure-JAX reference
        "ref_wi": wi, "ref_wh": wh,
    }


def reference_forward(x, p):
    """Pure-JAX f32 reference of the same GRU + head (PyTorch GRU gate semantics)."""
    B, T, D = x.shape
    H = p["ref_wh"].shape[0]
    h = jnp.zeros((B, H), jnp.float32)
    for t in range(T):
        gx = x[:, t, :] @ p["ref_wi"] + p["bi"]
        gh = h @ p["ref_wh"]
        r = jax.nn.sigmoid(gx[:, :H] + gh[:, :H])
        z = jax.nn.sigmoid(gx[:, H:2 * H] + gh[:, H:2 * H])
        n = jnp.tanh(gx[:, 2 * H:] + r * (gh[:, 2 * H:] + p["bhn"]))
        h = (1.0 - z) * n + z * h
    return jax.nn.sigmoid(jnp.sum(h * p["wlin"], axis=-1, keepdims=True) + p["blin"])


if __name__ == "__main__":
    key = jax.random.PRNGKey(0)
    kx, kp, kx2, kx3 = jax.random.split(key, 4)
    params = make_params(kp)
    # bf16 MXU operands vs the f32 reference -> loosened tolerances
    RTOL, ATOL = 2e-2, 2e-2

    # Test 1: nominal small shape (B=2, T=8) — single time tile.
    x = jax.random.normal(kx, (2, 8, GLOVE_DIM), jnp.float32)
    out = jax.block_until_ready(rnn_forward(x, params))
    ref = reference_forward(x, params)
    np.testing.assert_allclose(np.asarray(out), np.asarray(ref), rtol=RTOL, atol=ATOL)
    assert out.shape == (2, 1)

    # Test 2: batch padding, single (T<T_TILE) time tile (B=3, T=12).
    x2 = jax.random.normal(kx2, (3, 12, GLOVE_DIM), jnp.float32)
    out2 = jax.block_until_ready(rnn_forward(x2, params))
    ref2 = reference_forward(x2, params)
    np.testing.assert_allclose(np.asarray(out2), np.asarray(ref2), rtol=RTOL, atol=ATOL)
    assert out2.shape == (3, 1)

    # Test 3: multi-tile time grid with ragged last tile + batch padding (B=5, T=20, t_tile=8).
    x3 = jax.random.normal(kx3, (5, 20, GLOVE_DIM), jnp.float32)
    out3 = jax.block_until_ready(rnn_forward(x3, params, t_tile=8))
    ref3 = reference_forward(x3, params)
    np.testing.assert_allclose(np.asarray(out3), np.asarray(ref3), rtol=RTOL, atol=ATOL)
    assert out3.shape == (5, 1)

    print("KERNEL_OK")
</pallas_src>

<mosaic_0001>
module attributes {stable_mosaic.version = 11 : i64} {
  func.func @gru_head_kernel(%arg0: i32, %arg1: i32, %arg2: memref<8x8x128xbf16, #tpu.memory_space<vmem>>, %arg3: memref<128x192xbf16, #tpu.memory_space<vmem>>, %arg4: memref<64x192xbf16, #tpu.memory_space<vmem>>, %arg5: memref<1x192xf32, #tpu.memory_space<vmem>>, %arg6: memref<1x64xf32, #tpu.memory_space<vmem>>, %arg7: memref<1x64xf32, #tpu.memory_space<vmem>>, %arg8: memref<1x1xf32, #tpu.memory_space<vmem>>, %arg9: memref<8x1xf32, #tpu.memory_space<vmem>>, %arg10: memref<8x64xf32, #tpu.memory_space<vmem>>) attributes {dimension_semantics = [#tpu.dimension_semantics<parallel>, #tpu.dimension_semantics<arbitrary>], iteration_bounds = array<i64: 1, 1>, scalar_prefetch = 0 : i64, scratch_operands = 1 : i64, tpu.core_type = #tpu.core_type<tc>, window_params = [{transform_indices = @transform_0, window_bounds = array<i64: 8, 8, 128>}, {pipeline_mode = #tpu.pipeline_mode<synchronous>, transform_indices = @transform_1, window_bounds = array<i64: 128, 192>}, {pipeline_mode = #tpu.pipeline_mode<synchronous>, transform_indices = @transform_2, window_bounds = array<i64: 64, 192>}, {pipeline_mode = #tpu.pipeline_mode<synchronous>, transform_indices = @transform_3, window_bounds = array<i64: 1, 192>}, {pipeline_mode = #tpu.pipeline_mode<synchronous>, transform_indices = @transform_4, window_bounds = array<i64: 1, 64>}, {pipeline_mode = #tpu.pipeline_mode<synchronous>, transform_indices = @transform_5, window_bounds = array<i64: 1, 64>}, {pipeline_mode = #tpu.pipeline_mode<synchronous>, transform_indices = @transform_6, window_bounds = array<i64: 1, 1>}, {transform_indices = @transform_7, window_bounds = array<i64: 8, 1>}]} {
    %c0_i32 = arith.constant 0 : i32
    %0 = arith.cmpi eq, %arg1, %c0_i32 : i32
    %1 = arith.extui %0 : i1 to i32
    %c0_i32_0 = arith.constant 0 : i32
    %2 = arith.cmpi ne, %1, %c0_i32_0 : i32
    scf.if %2 {
      %cst_33 = arith.constant 0.000000e+00 : f32
      %212 = vector.broadcast %cst_33 : f32 to vector<8x64xf32>
      %c0_34 = arith.constant 0 : index
      %c0_35 = arith.constant 0 : index
      %213 = vector.load %arg10[%c0_34, %c0_35] : memref<8x64xf32, #tpu.memory_space<vmem>>, vector<8x64xf32>
      tpu.vector_store %arg10[%c0_34, %c0_35], %212 {strides = array<i32>} : memref<8x64xf32, #tpu.memory_space<vmem>>, vector<8x64xf32>,
    } else {
    }
    %c0 = arith.constant 0 : index
    %c0_1 = arith.constant 0 : index
    %c0_2 = arith.constant 0 : index
    %3 = vector.load %arg2[%c0, %c0_1, %c0_2] : memref<8x8x128xbf16, #tpu.memory_space<vmem>>, vector<8x8x128xbf16>
    %4 = vector.shape_cast %3 : vector<8x8x128xbf16> to vector<64x128xbf16>
    %c0_3 = arith.constant 0 : index
    %c0_4 = arith.constant 0 : index
    %5 = vector.load %arg3[%c0_3, %c0_4] : memref<128x192xbf16, #tpu.memory_space<vmem>>, vector<128x192xbf16>
    %cst = arith.constant dense<0.000000e+00> : vector<64x192xf32>
    %6 = tpu.matmul %4, %5, %cst {dimension_numbers = #tpu.dot_dimension_numbers<[1], [0], [0], [1], [0, 0, 1, 1], [], []>} : vector<64x128xbf16>, vector<128x192xbf16>, vector<64x192xf32> -> vector<64x192xf32>
    %7 = vector.shape_cast %6 : vector<64x192xf32> to vector<8x8x192xf32>
    %c0_5 = arith.constant 0 : index
    %c0_6 = arith.constant 0 : index
    %8 = vector.load %arg5[%c0_5, %c0_6] : memref<1x192xf32, #tpu.memory_space<vmem>>, vector<1x192xf32>
    %9 = vector.shape_cast %8 : vector<1x192xf32> to vector<1x192xf32>
    %10 = vector.broadcast %9 : vector<1x192xf32> to vector<8x192xf32>
    %c0_7 = arith.constant 0 : index
    %c0_8 = arith.constant 0 : index
    %11 = vector.load %arg6[%c0_7, %c0_8] : memref<1x64xf32, #tpu.memory_space<vmem>>, vector<1x64xf32>
    %12 = vector.shape_cast %11 : vector<1x64xf32> to vector<1x64xf32>
    %13 = vector.broadcast %12 : vector<1x64xf32> to vector<8x64xf32>
    %c0_9 = arith.constant 0 : index
    %c0_10 = arith.constant 0 : index
    %14 = vector.load %arg4[%c0_9, %c0_10] : memref<64x192xbf16, #tpu.memory_space<vmem>>, vector<64x192xbf16>
    %c0_11 = arith.constant 0 : index
    %c0_12 = arith.constant 0 : index
    %15 = vector.load %arg10[%c0_11, %c0_12] : memref<8x64xf32, #tpu.memory_space<vmem>>, vector<8x64xf32>
    %16 = vector.extract_strided_slice %7 {offsets = [0, 0, 0], sizes = [1, 8, 192], strides = [1, 1, 1]} : vector<8x8x192xf32> to vector<1x8x192xf32>
    %17 = vector.shape_cast %16 : vector<1x8x192xf32> to vector<8x192xf32>
    %18 = arith.addf %17, %10 : vector<8x192xf32>
    %19 = arith.truncf %15 : vector<8x64xf32> to vector<8x64xbf16>
    %cst_13 = arith.constant dense<0.000000e+00> : vector<8x192xf32>
    %20 = tpu.matmul %19, %14, %cst_13 {dimension_numbers = #tpu.dot_dimension_numbers<[1], [0], [0], [1], [0, 0, 1, 1], [], []>} : vector<8x64xbf16>, vector<64x192xbf16>, vector<8x192xf32> -> vector<8x192xf32>
    %21 = vector.extract_strided_slice %18 {offsets = [0, 0], sizes = [8, 128], strides = [1, 1]} : vector<8x192xf32> to vector<8x128xf32>
    %22 = vector.extract_strided_slice %20 {offsets = [0, 0], sizes = [8, 128], strides = [1, 1]} : vector<8x192xf32> to vector<8x128xf32>
    %23 = arith.addf %21, %22 : vector<8x128xf32>
    %24 = arith.negf %23 : vector<8x128xf32>
    %25 = math.exp %24 : vector<8x128xf32>
    %cst_14 = arith.constant 1.000000e+00 : f32
    %26 = vector.broadcast %cst_14 : f32 to vector<8x128xf32>
    %27 = arith.addf %26, %25 : vector<8x128xf32>
    %28 = arith.divf %26, %27 : vector<8x128xf32>
    %29 = vector.extract_strided_slice %28 {offsets = [0, 0], sizes = [8, 64], strides = [1, 1]} : vector<8x128xf32> to vector<8x64xf32>
    %30 = vector.extract_strided_slice %28 {offsets = [0, 64], sizes = [8, 64], strides = [1, 1]} : vector<8x128xf32> to vector<8x64xf32>
    %31 = vector.extract_strided_slice %18 {offsets = [0, 128], sizes = [8, 64], strides = [1, 1]} : vector<8x192xf32> to vector<8x64xf32>
    %32 = vector.extract_strided_slice %20 {offsets = [0, 128], sizes = [8, 64], strides = [1, 1]} : vector<8x192xf32> to vector<8x64xf32>
    %33 = arith.addf %32, %13 : vector<8x64xf32>
    %34 = arith.mulf %29, %33 : vector<8x64xf32>
    %35 = arith.addf %31, %34 : vector<8x64xf32>
    %36 = math.tanh %35 : vector<8x64xf32>
    %37 = arith.subf %15, %36 : vector<8x64xf32>
    %38 = arith.mulf %30, %37 : vector<8x64xf32>
    %39 = arith.addf %36, %38 : vector<8x64xf32>
    %40 = vector.extract_strided_slice %7 {offsets = [1, 0, 0], sizes = [1, 8, 192], strides = [1, 1, 1]} : vector<8x8x192xf32> to vector<1x8x192xf32>
    %41 = vector.shape_cast %40 : vector<1x8x192xf32> to vector<8x192xf32>
    %42 = arith.addf %41, %10 : vector<8x192xf32>
    %43 = arith.truncf %39 : vector<8x64xf32> to vector<8x64xbf16>
    %cst_15 = arith.constant dense<0.000000e+00> : vector<8x192xf32>
    %44 = tpu.matmul %43, %14, %cst_15 {dimension_numbers = #tpu.dot_dimension_numbers<[1], [0], [0], [1], [0, 0, 1, 1], [], []>} : vector<8x64xbf16>, vector<64x192xbf16>, vector<8x192xf32> -> vector<8x192xf32>
    %45 = vector.extract_strided_slice %42 {offsets = [0, 0], sizes = [8, 128], strides = [1, 1]} : vector<8x192xf32> to vector<8x128xf32>
    %46 = vector.extract_strided_slice %44 {offsets = [0, 0], sizes = [8, 128], strides = [1, 1]} : vector<8x192xf32> to vector<8x128xf32>
    %47 = arith.addf %45, %46 : vector<8x128xf32>
    %48 = arith.negf %47 : vector<8x128xf32>
    %49 = math.exp %48 : vector<8x128xf32>
    %cst_16 = arith.constant 1.000000e+00 : f32
    %50 = vector.broadcast %cst_16 : f32 to vector<8x128xf32>
    %51 = arith.addf %50, %49 : vector<8x128xf32>
    %52 = arith.divf %50, %51 : vector<8x128xf32>
    %53 = vector.extract_strided_slice %52 {offsets = [0, 0], sizes = [8, 64], strides = [1, 1]} : vector<8x128xf32> to vector<8x64xf32>
    %54 = vector.extract_strided_slice %52 {offsets = [0, 64], sizes = [8, 64], strides = [1, 1]} : vector<8x128xf32> to vector<8x64xf32>
    %55 = vector.extract_strided_slice %42 {offsets = [0, 128], sizes = [8, 64], strides = [1, 1]} : vector<8x192xf32> to vector<8x64xf32>
    %56 = vector.extract_strided_slice %44 {offsets = [0, 128], sizes = [8, 64], strides = [1, 1]} : vector<8x192xf32> to vector<8x64xf32>
    %57 = arith.addf %56, %13 : vector<8x64xf32>
    %58 = arith.mulf %53, %57 : vector<8x64xf32>
    %59 = arith.addf %55, %58 : vector<8x64xf32>
    %60 = math.tanh %59 : vector<8x64xf32>
    %61 = arith.subf %39, %60 : vector<8x64xf32>
    %62 = arith.mulf %54, %61 : vector<8x64xf32>
    %63 = arith.addf %60, %62 : vector<8x64xf32>
    %64 = vector.extract_strided_slice %7 {offsets = [2, 0, 0], sizes = [1, 8, 192], strides = [1, 1, 1]} : vector<8x8x192xf32> to vector<1x8x192xf32>
    %65 = vector.shape_cast %64 : vector<1x8x192xf32> to vector<8x192xf32>
    %66 = arith.addf %65, %10 : vector<8x192xf32>
    %67 = arith.truncf %63 : vector<8x64xf32> to vector<8x64xbf16>
    %cst_17 = arith.constant dense<0.000000e+00> : vector<8x192xf32>
    %68 = tpu.matmul %67, %14, %cst_17 {dimension_numbers = #tpu.dot_dimension_numbers<[1], [0], [0], [1], [0, 0, 1, 1], [], []>} : vector<8x64xbf16>, vector<64x192xbf16>, vector<8x192xf32> -> vector<8x192xf32>
    %69 = vector.extract_strided_slice %66 {offsets = [0, 0], sizes = [8, 128], strides = [1, 1]} : vector<8x192xf32> to vector<8x128xf32>
    %70 = vector.extract_strided_slice %68 {offsets = [0, 0], sizes = [8, 128], strides = [1, 1]} : vector<8x192xf32> to vector<8x128xf32>
    %71 = arith.addf %69, %70 : vector<8x128xf32>
    %72 = arith.negf %71 : vector<8x128xf32>
    %73 = math.exp %72 : vector<8x128xf32>
    %cst_18 = arith.constant 1.000000e+00 : f32
    %74 = vector.broadcast %cst_18 : f32 to vector<8x128xf32>
    %75 = arith.addf %74, %73 : vector<8x128xf32>
    %76 = arith.divf %74, %75 : vector<8x128xf32>
    %77 = vector.extract_strided_slice %76 {offsets = [0, 0], sizes = [8, 64], strides = [1, 1]} : vector<8x128xf32> to vector<8x64xf32>
    %78 = vector.extract_strided_slice %76 {offsets = [0, 64], sizes = [8, 64], strides = [1, 1]} : vector<8x128xf32> to vector<8x64xf32>
    %79 = vector.extract_strided_slice %66 {offsets = [0, 128], sizes = [8, 64], strides = [1, 1]} : vector<8x192xf32> to vector<8x64xf32>
    %80 = vector.extract_strided_slice %68 {offsets = [0, 128], sizes = [8, 64], strides = [1, 1]} : vector<8x192xf32> to vector<8x64xf32>
    %81 = arith.addf %80, %13 : vector<8x64xf32>
    %82 = arith.mulf %77, %81 : vector<8x64xf32>
    %83 = arith.addf %79, %82 : vector<8x64xf32>
    %84 = math.tanh %83 : vector<8x64xf32>
    %85 = arith.subf %63, %84 : vector<8x64xf32>
    %86 = arith.mulf %78, %85 : vector<8x64xf32>
    %87 = arith.addf %84, %86 : vector<8x64xf32>
    %88 = vector.extract_strided_slice %7 {offsets = [3, 0, 0], sizes = [1, 8, 192], strides = [1, 1, 1]} : vector<8x8x192xf32> to vector<1x8x192xf32>
    %89 = vector.shape_cast %88 : vector<1x8x192xf32> to vector<8x192xf32>
    %90 = arith.addf %89, %10 : vector<8x192xf32>
    %91 = arith.truncf %87 : vector<8x64xf32> to vector<8x64xbf16>
    %cst_19 = arith.constant dense<0.000000e+00> : vector<8x192xf32>
    %92 = tpu.matmul %91, %14, %cst_19 {dimension_numbers = #tpu.dot_dimension_numbers<[1], [0], [0], [1], [0, 0, 1, 1], [], []>} : vector<8x64xbf16>, vector<64x192xbf16>, vector<8x192xf32> -> vector<8x192xf32>
    %93 = vector.extract_strided_slice %90 {offsets = [0, 0], sizes = [8, 128], strides = [1, 1]} : vector<8x192xf32> to vector<8x128xf32>
    %94 = vector.extract_strided_slice %92 {offsets = [0, 0], sizes = [8, 128], strides = [1, 1]} : vector<8x192xf32> to vector<8x128xf32>
    %95 = arith.addf %93, %94 : vector<8x128xf32>
    %96 = arith.negf %95 : vector<8x128xf32>
    %97 = math.exp %96 : vector<8x128xf32>
    %cst_20 = arith.constant 1.000000e+00 : f32
    %98 = vector.broadcast %cst_20 : f32 to vector<8x128xf32>
    %99 = arith.addf %98, %97 : vector<8x128xf32>
    %100 = arith.divf %98, %99 : vector<8x128xf32>
    %101 = vector.extract_strided_slice %100 {offsets = [0, 0], sizes = [8, 64], strides = [1, 1]} : vector<8x128xf32> to vector<8x64xf32>
    %102 = vector.extract_strided_slice %100 {offsets = [0, 64], sizes = [8, 64], strides = [1, 1]} : vector<8x128xf32> to vector<8x64xf32>
    %103 = vector.extract_strided_slice %90 {offsets = [0, 128], sizes = [8, 64], strides = [1, 1]} : vector<8x192xf32> to vector<8x64xf32>
    %104 = vector.extract_strided_slice %92 {offsets = [0, 128], sizes = [8, 64], strides = [1, 1]} : vector<8x192xf32> to vector<8x64xf32>
    %105 = arith.addf %104, %13 : vector<8x64xf32>
    %106 = arith.mulf %101, %105 : vector<8x64xf32>
    %107 = arith.addf %103, %106 : vector<8x64xf32>
    %108 = math.tanh %107 : vector<8x64xf32>
    %109 = arith.subf %87, %108 : vector<8x64xf32>
    %110 = arith.mulf %102, %109 : vector<8x64xf32>
    %111 = arith.addf %108, %110 : vector<8x64xf32>
    %112 = vector.extract_strided_slice %7 {offsets = [4, 0, 0], sizes = [1, 8, 192], strides = [1, 1, 1]} : vector<8x8x192xf32> to vector<1x8x192xf32>
    %113 = vector.shape_cast %112 : vector<1x8x192xf32> to vector<8x192xf32>
    %114 = arith.addf %113, %10 : vector<8x192xf32>
    %115 = arith.truncf %111 : vector<8x64xf32> to vector<8x64xbf16>
    %cst_21 = arith.constant dense<0.000000e+00> : vector<8x192xf32>
    %116 = tpu.matmul %115, %14, %cst_21 {dimension_numbers = #tpu.dot_dimension_numbers<[1], [0], [0], [1], [0, 0, 1, 1], [], []>} : vector<8x64xbf16>, vector<64x192xbf16>, vector<8x192xf32> -> vector<8x192xf32>
    %117 = vector.extract_strided_slice %114 {offsets = [0, 0], sizes = [8, 128], strides = [1, 1]} : vector<8x192xf32> to vector<8x128xf32>
    %118 = vector.extract_strided_slice %116 {offsets = [0, 0], sizes = [8, 128], strides = [1, 1]} : vector<8x192xf32> to vector<8x128xf32>
    %119 = arith.addf %117, %118 : vector<8x128xf32>
    %120 = arith.negf %119 : vector<8x128xf32>
    %121 = math.exp %120 : vector<8x128xf32>
    %cst_22 = arith.constant 1.000000e+00 : f32
    %122 = vector.broadcast %cst_22 : f32 to vector<8x128xf32>
    %123 = arith.addf %122, %121 : vector<8x128xf32>
    %124 = arith.divf %122, %123 : vector<8x128xf32>
    %125 = vector.extract_strided_slice %124 {offsets = [0, 0], sizes = [8, 64], strides = [1, 1]} : vector<8x128xf32> to vector<8x64xf32>
    %126 = vector.extract_strided_slice %124 {offsets = [0, 64], sizes = [8, 64], strides = [1, 1]} : vector<8x128xf32> to vector<8x64xf32>
    %127 = vector.extract_strided_slice %114 {offsets = [0, 128], sizes = [8, 64], strides = [1, 1]} : vector<8x192xf32> to vector<8x64xf32>
    %128 = vector.extract_strided_slice %116 {offsets = [0, 128], sizes = [8, 64], strides = [1, 1]} : vector<8x192xf32> to vector<8x64xf32>
    %129 = arith.addf %128, %13 : vector<8x64xf32>
    %130 = arith.mulf %125, %129 : vector<8x64xf32>
    %131 = arith.addf %127, %130 : vector<8x64xf32>
    %132 = math.tanh %131 : vector<8x64xf32>
    %133 = arith.subf %111, %132 : vector<8x64xf32>
    %134 = arith.mulf %126, %133 : vector<8x64xf32>
    %135 = arith.addf %132, %134 : vector<8x64xf32>
    %136 = vector.extract_strided_slice %7 {offsets = [5, 0, 0], sizes = [1, 8, 192], strides = [1, 1, 1]} : vector<8x8x192xf32> to vector<1x8x192xf32>
    %137 = vector.shape_cast %136 : vector<1x8x192xf32> to vector<8x192xf32>
    %138 = arith.addf %137, %10 : vector<8x192xf32>
    %139 = arith.truncf %135 : vector<8x64xf32> to vector<8x64xbf16>
    %cst_23 = arith.constant dense<0.000000e+00> : vector<8x192xf32>
    %140 = tpu.matmul %139, %14, %cst_23 {dimension_numbers = #tpu.dot_dimension_numbers<[1], [0], [0], [1], [0, 0, 1, 1], [], []>} : vector<8x64xbf16>, vector<64x192xbf16>, vector<8x192xf32> -> vector<8x192xf32>
    %141 = vector.extract_strided_slice %138 {offsets = [0, 0], sizes = [8, 128], strides = [1, 1]} : vector<8x192xf32> to vector<8x128xf32>
    %142 = vector.extract_strided_slice %140 {offsets = [0, 0], sizes = [8, 128], strides = [1, 1]} : vector<8x192xf32> to vector<8x128xf32>
    %143 = arith.addf %141, %142 : vector<8x128xf32>
    %144 = arith.negf %143 : vector<8x128xf32>
    %145 = math.exp %144 : vector<8x128xf32>
    %cst_24 = arith.constant 1.000000e+00 : f32
    %146 = vector.broadcast %cst_24 : f32 to vector<8x128xf32>
    %147 = arith.addf %146, %145 : vector<8x128xf32>
    %148 = arith.divf %146, %147 : vector<8x128xf32>
    %149 = vector.extract_strided_slice %148 {offsets = [0, 0], sizes = [8, 64], strides = [1, 1]} : vector<8x128xf32> to vector<8x64xf32>
    %150 = vector.extract_strided_slice %148 {offsets = [0, 64], sizes = [8, 64], strides = [1, 1]} : vector<8x128xf32> to vector<8x64xf32>
    %151 = vector.extract_strided_slice %138 {offsets = [0, 128], sizes = [8, 64], strides = [1, 1]} : vector<8x192xf32> to vector<8x64xf32>
    %152 = vector.extract_strided_slice %140 {offsets = [0, 128], sizes = [8, 64], strides = [1, 1]} : vector<8x192xf32> to vector<8x64xf32>
    %153 = arith.addf %152, %13 : vector<8x64xf32>
    %154 = arith.mulf %149, %153 : vector<8x64xf32>
    %155 = arith.addf %151, %154 : vector<8x64xf32>
    %156 = math.tanh %155 : vector<8x64xf32>
    %157 = arith.subf %135, %156 : vector<8x64xf32>
    %158 = arith.mulf %150, %157 : vector<8x64xf32>
    %159 = arith.addf %156, %158 : vector<8x64xf32>
    %160 = vector.extract_strided_slice %7 {offsets = [6, 0, 0], sizes = [1, 8, 192], strides = [1, 1, 1]} : vector<8x8x192xf32> to vector<1x8x192xf32>
    %161 = vector.shape_cast %160 : vector<1x8x192xf32> to vector<8x192xf32>
    %162 = arith.addf %161, %10 : vector<8x192xf32>
    %163 = arith.truncf %159 : vector<8x64xf32> to vector<8x64xbf16>
    %cst_25 = arith.constant dense<0.000000e+00> : vector<8x192xf32>
    %164 = tpu.matmul %163, %14, %cst_25 {dimension_numbers = #tpu.dot_dimension_numbers<[1], [0], [0], [1], [0, 0, 1, 1], [], []>} : vector<8x64xbf16>, vector<64x192xbf16>, vector<8x192xf32> -> vector<8x192xf32>
    %165 = vector.extract_strided_slice %162 {offsets = [0, 0], sizes = [8, 128], strides = [1, 1]} : vector<8x192xf32> to vector<8x128xf32>
    %166 = vector.extract_strided_slice %164 {offsets = [0, 0], sizes = [8, 128], strides = [1, 1]} : vector<8x192xf32> to vector<8x128xf32>
    %167 = arith.addf %165, %166 : vector<8x128xf32>
    %168 = arith.negf %167 : vector<8x128xf32>
    %169 = math.exp %168 : vector<8x128xf32>
    %cst_26 = arith.constant 1.000000e+00 : f32
    %170 = vector.broadcast %cst_26 : f32 to vector<8x128xf32>
    %171 = arith.addf %170, %169 : vector<8x128xf32>
    %172 = arith.divf %170, %171 : vector<8x128xf32>
    %173 = vector.extract_strided_slice %172 {offsets = [0, 0], sizes = [8, 64], strides = [1, 1]} : vector<8x128xf32> to vector<8x64xf32>
    %174 = vector.extract_strided_slice %172 {offsets = [0, 64], sizes = [8, 64], strides = [1, 1]} : vector<8x128xf32> to vector<8x64xf32>
    %175 = vector.extract_strided_slice %162 {offsets = [0, 128], sizes = [8, 64], strides = [1, 1]} : vector<8x192xf32> to vector<8x64xf32>
    %176 = vector.extract_strided_slice %164 {offsets = [0, 128], sizes = [8, 64], strides = [1, 1]} : vector<8x192xf32> to vector<8x64xf32>
    %177 = arith.addf %176, %13 : vector<8x64xf32>
    %178 = arith.mulf %173, %177 : vector<8x64xf32>
    %179 = arith.addf %175, %178 : vector<8x64xf32>
    %180 = math.tanh %179 : vector<8x64xf32>
    %181 = arith.subf %159, %180 : vector<8x64xf32>
    %182 = arith.mulf %174, %181 : vector<8x64xf32>
    %183 = arith.addf %180, %182 : vector<8x64xf32>
    %184 = vector.extract_strided_slice %7 {offsets = [7, 0, 0], sizes = [1, 8, 192], strides = [1, 1, 1]} : vector<8x8x192xf32> to vector<1x8x192xf32>
    %185 = vector.shape_cast %184 : vector<1x8x192xf32> to vector<8x192xf32>
    %186 = arith.addf %185, %10 : vector<8x192xf32>
    %187 = arith.truncf %183 : vector<8x64xf32> to vector<8x64xbf16>
    %cst_27 = arith.constant dense<0.000000e+00> : vector<8x192xf32>
    %188 = tpu.matmul %187, %14, %cst_27 {dimension_numbers = #tpu.dot_dimension_numbers<[1], [0], [0], [1], [0, 0, 1, 1], [], []>} : vector<8x64xbf16>, vector<64x192xbf16>, vector<8x192xf32> -> vector<8x192xf32>
    %189 = vector.extract_strided_slice %186 {offsets = [0, 0], sizes = [8, 128], strides = [1, 1]} : vector<8x192xf32> to vector<8x128xf32>
    %190 = vector.extract_strided_slice %188 {offsets = [0, 0], sizes = [8, 128], strides = [1, 1]} : vector<8x192xf32> to vector<8x128xf32>
    %191 = arith.addf %189, %190 : vector<8x128xf32>
    %192 = arith.negf %191 : vector<8x128xf32>
    %193 = math.exp %192 : vector<8x128xf32>
    %cst_28 = arith.constant 1.000000e+00 : f32
    %194 = vector.broadcast %cst_28 : f32 to vector<8x128xf32>
    %195 = arith.addf %194, %193 : vector<8x128xf32>
    %196 = arith.divf %194, %195 : vector<8x128xf32>
    %197 = vector.extract_strided_slice %196 {offsets = [0, 0], sizes = [8, 64], strides = [1, 1]} : vector<8x128xf32> to vector<8x64xf32>
    %198 = vector.extract_strided_slice %196 {offsets = [0, 64], sizes = [8, 64], strides = [1, 1]} : vector<8x128xf32> to vector<8x64xf32>
    %199 = vector.extract_strided_slice %186 {offsets = [0, 128], sizes = [8, 64], strides = [1, 1]} : vector<8x192xf32> to vector<8x64xf32>
    %200 = vector.extract_strided_slice %188 {offsets = [0, 128], sizes = [8, 64], strides = [1, 1]} : vector<8x192xf32> to vector<8x64xf32>
    %201 = arith.addf %200, %13 : vector<8x64xf32>
    %202 = arith.mulf %197, %201 : vector<8x64xf32>
    %203 = arith.addf %199, %202 : vector<8x64xf32>
    %204 = math.tanh %203 : vector<8x64xf32>
    %205 = arith.subf %183, %204 : vector<8x64xf32>
    %206 = arith.mulf %198, %205 : vector<8x64xf32>
    %207 = arith.addf %204, %206 : vector<8x64xf32>
    %c0_29 = arith.constant 0 : index
    %c0_30 = arith.constant 0 : index
    %208 = vector.load %arg10[%c0_29, %c0_30] : memref<8x64xf32, #tpu.memory_space<vmem>>, vector<8x64xf32>
    tpu.vector_store %arg10[%c0_29, %c0_30], %207 {strides = array<i32>} : memref<8x64xf32, #tpu.memory_space<vmem>>, vector<8x64xf32>,
    %c0_i32_31 = arith.constant 0 : i32
    %209 = arith.cmpi eq, %arg1, %c0_i32_31 : i32
    %210 = arith.extui %209 : i1 to i32
    %c0_i32_32 = arith.constant 0 : i32
    %211 = arith.cmpi ne, %210, %c0_i32_32 : i32
    scf.if %211 {
      %c0_33 = arith.constant 0 : index
      %c0_34 = arith.constant 0 : index
      %212 = vector.load %arg10[%c0_33, %c0_34] : memref<8x64xf32, #tpu.memory_space<vmem>>, vector<8x64xf32>
      %c0_35 = arith.constant 0 : index
      %c0_36 = arith.constant 0 : index
      %213 = vector.load %arg7[%c0_35, %c0_36] : memref<1x64xf32, #tpu.memory_space<vmem>>, vector<1x64xf32>
      %214 = vector.broadcast %213 : vector<1x64xf32> to vector<8x64xf32>
      %215 = arith.mulf %212, %214 : vector<8x64xf32>
      %cst_37 = arith.constant dense<0.000000e+00> : vector<8xf32>
      %216 = vector.multi_reduction <add>, %215, %cst_37 [1] : vector<8x64xf32> to vector<8xf32>
      %217 = vector.shape_cast %216 : vector<8xf32> to vector<8x1xf32>
      %c0_38 = arith.constant 0 : index
      %c0_39 = arith.constant 0 : index
      %218 = vector.load %arg8[%c0_38, %c0_39] : memref<1x1xf32, #tpu.memory_space<vmem>>, vector<1x1xf32>
      %219 = vector.broadcast %218 : vector<1x1xf32> to vector<8x1xf32>
      %220 = arith.addf %217, %219 : vector<8x1xf32>
      %221 = arith.negf %220 : vector<8x1xf32>
      %222 = math.exp %221 : vector<8x1xf32>
      %cst_40 = arith.constant 1.000000e+00 : f32
      %223 = vector.broadcast %cst_40 : f32 to vector<8x1xf32>
      %224 = arith.addf %223, %222 : vector<8x1xf32>
      %225 = arith.divf %223, %224 : vector<8x1xf32>
      %c0_41 = arith.constant 0 : index
      %c0_42 = arith.constant 0 : index
      %226 = vector.load %arg9[%c0_41, %c0_42] : memref<8x1xf32, #tpu.memory_space<vmem>>, vector<8x1xf32>
      tpu.vector_store %arg9[%c0_41, %c0_42], %225 {strides = array<i32>} : memref<8x1xf32, #tpu.memory_space<vmem>>, vector<8x1xf32>,
    } else {
    }
    return
  }
  func.func @transform_0(%arg0: i32, %arg1: i32) -> (i32, i32, i32) {
    %c0_i32 = arith.constant 0 : i32
    %c0_i32_0 = arith.constant 0 : i32
    return %arg1, %arg0, %c0_i32 : i32, i32, i32
  }
  func.func @transform_1(%arg0: i32, %arg1: i32) -> (i32, i32) {
    %c0_i32 = arith.constant 0 : i32
    %c0_i32_0 = arith.constant 0 : i32
    %c0_i32_1 = arith.constant 0 : i32
    return %c0_i32, %c0_i32_0 : i32, i32
  }
  func.func @transform_2(%arg0: i32, %arg1: i32) -> (i32, i32) {
    %c0_i32 = arith.constant 0 : i32
    %c0_i32_0 = arith.constant 0 : i32
    %c0_i32_1 = arith.constant 0 : i32
    return %c0_i32, %c0_i32_0 : i32, i32
  }
  func.func @transform_3(%arg0: i32, %arg1: i32) -> (i32, i32) {
    %c0_i32 = arith.constant 0 : i32
    %c0_i32_0 = arith.constant 0 : i32
    %c0_i32_1 = arith.constant 0 : i32
    return %c0_i32, %c0_i32_0 : i32, i32
  }
  func.func @transform_4(%arg0: i32, %arg1: i32) -> (i32, i32) {
    %c0_i32 = arith.constant 0 : i32
    %c0_i32_0 = arith.constant 0 : i32
    %c0_i32_1 = arith.constant 0 : i32
    return %c0_i32, %c0_i32_0 : i32, i32
  }
  func.func @transform_5(%arg0: i32, %arg1: i32) -> (i32, i32) {
    %c0_i32 = arith.constant 0 : i32
    %c0_i32_0 = arith.constant 0 : i32
    %c0_i32_1 = arith.constant 0 : i32
    return %c0_i32, %c0_i32_0 : i32, i32
  }
  func.func @transform_6(%arg0: i32, %arg1: i32) -> (i32, i32) {
    %c0_i32 = arith.constant 0 : i32
    %c0_i32_0 = arith.constant 0 : i32
    %c0_i32_1 = arith.constant 0 : i32
    return %c0_i32, %c0_i32_0 : i32, i32
  }
  func.func @transform_7(%arg0: i32, %arg1: i32) -> (i32, i32) {
    %c0_i32 = arith.constant 0 : i32
    %c0_i32_0 = arith.constant 0 : i32
    return %arg0, %c0_i32 : i32, i32
  }
}

</mosaic_0001>

<llo_original>
// kernel: tpu_custom_call.1
$region0: #{tpu_custom_call.1}
  #allocation0 [shape = 'u32[]', space=smem, size = 0x4, offset = 0x4, fixed_abs, tag = 'smem constant byte address 0x4 - core index']
  #allocation1 [shape = 'u32[144,128]{1,0:T(1,128)}', space=vmem, size = 0x12000, scoped, tag = 'internal scratch']
  #allocation2 [shape = 'f32[8,64]{1,0:T(8,128)}', space=vmem, size = 0x1000, scoped, tag = 'scratch operand']
  #allocation3 [shape = 'f32[1,1]{1,0:T(1,128)S(1)}', space=vmem, size = 0x200, scoped, tag = 'scoped memory for tpu_custom_call.1']
  %s0 = inlined_call_operand.vmem [shape: bf16[8,8,128], index: 0, kind: input, shape index: {}]
  %s1 = inlined_call_operand.vmem [shape: bf16[128,192], index: 1, kind: input, shape index: {}]
  %s2 = inlined_call_operand.vmem [shape: bf16[64,192], index: 2, kind: input, shape index: {}]
  %s3 = inlined_call_operand.vmem [shape: f32[1,192], index: 3, kind: input, shape index: {}]
  %s4 = inlined_call_operand.vmem [shape: f32[1,64], index: 4, kind: input, shape index: {}]
  %s5 = inlined_call_operand.vmem [shape: f32[1,64], index: 5, kind: input, shape index: {}]
  %s6 = inlined_call_operand.<no memory space> [shape: f32[1,1], index: 6, kind: input, shape index: {}]
  %s7 = inlined_call_operand.vmem [shape: f32[8,1], index: 7, kind: output, shape index: {}]
  %s8 = sld [smem:[#allocation0]]
  $region46: #{tpu_custom_call.1} parent=0
    _
  %s10 = ssub.s32 1, %s8
  %s11 = scalar_select 0, %s10, %s8
  %v12 = vstv %s6
  %13 = vst [vmem:[#allocation3] sm:$0x1] %v12
  // Predicated region
  $region2: #{tpu_custom_call.1} parent=0 // pred_check
    _
  $region3: #{tpu_custom_call.1} parent=0 // pred_check_branch
    %15 = sbr.rel (0) target = $region5
  $region4: #{tpu_custom_call.1} parent=0 // pred_region
    _
  $region5: #{tpu_custom_call.1} parent=0 // pred_fallthru
    _
  // Predicated region
  $region6: #{tpu_custom_call.1} parent=0 // pred_check
    _
  $region7: #{tpu_custom_call.1} parent=0 // pred_check_branch
    %17 = sbr.rel (0) target = $region9
  $region8: #{tpu_custom_call.1} parent=0 // pred_region
    _
  $region9: #{tpu_custom_call.1} parent=0 // pred_fallthru
    _
  // Predicated region
  $region10: #{tpu_custom_call.1} parent=0 // pred_check
    _
  $region11: #{tpu_custom_call.1} parent=0 // pred_check_branch
    %19 = sbr.rel (0) target = $region13
  $region12: #{tpu_custom_call.1} parent=0 // pred_region
    _
  $region13: #{tpu_custom_call.1} parent=0 // pred_fallthru
    _
  // Predicated region
  $region14: #{tpu_custom_call.1} parent=0 // pred_check
    _
  $region15: #{tpu_custom_call.1} parent=0 // pred_check_branch
    %21 = sbr.rel (0) target = $region17
  $region16: #{tpu_custom_call.1} parent=0 // pred_region
    _
  $region17: #{tpu_custom_call.1} parent=0 // pred_fallthru
    _
  // Predicated region
  $region18: #{tpu_custom_call.1} parent=0 // pred_check
    _
  $region19: #{tpu_custom_call.1} parent=0 // pred_check_branch
    %23 = sbr.rel (0) target = $region21
  $region20: #{tpu_custom_call.1} parent=0 // pred_region
    _
  $region21: #{tpu_custom_call.1} parent=0 // pred_fallthru
    _
  // Predicated region
  $region22: #{tpu_custom_call.1} parent=0 // pred_check
    _
  $region23: #{tpu_custom_call.1} parent=0 // pred_check_branch
    %25 = sbr.rel (0) target = $region25
  $region24: #{tpu_custom_call.1} parent=0 // pred_region
    _
  $region25: #{tpu_custom_call.1} parent=0 // pred_fallthru
    _
  // Predicated region
  $region26: #{tpu_custom_call.1} parent=0 // pred_check
    _
  $region27: #{tpu_custom_call.1} parent=0 // pred_check_branch
    %27 = sbr.rel (0) target = $region29
  $region28: #{tpu_custom_call.1} parent=0 // pred_region
    _
  $region29: #{tpu_custom_call.1} parent=0 // pred_fallthru
    _
  %p29 = scmp.eq.s32.totalorder 0, 0
  // Predicated region
  $region30: #{tpu_custom_call.1} parent=0 // pred_check
    %p30 = pneg %p29
  $region31: #{tpu_custom_call.1} parent=0 // pred_check_branch
    %32 = sbr.rel (%p30) target = $region33
  $region32: #{tpu_custom_call.1} parent=0 // pred_region
    %vm33 = vcmask 523264
    %34 = vst.msk [vmem:[#allocation2] sm:$0xff] %vm33, 0.0
  $region33: #{tpu_custom_call.1} parent=0 // pred_fallthru
    _
  %v35 = vld [vmem:[%s0] sm:$0xf]
  %v36 = vld [vmem:[%s0 + $0x4] sm:$0xf]
  %v37 = vld [vmem:[%s0 + $0x8] sm:$0xf]
  %v38 = vld [vmem:[%s0 + $0xc] sm:$0xf]
  %v39 = vld [vmem:[%s0 + $0x10] sm:$0xf]
  %v40 = vld [vmem:[%s0 + $0x14] sm:$0xf]
  %v41 = vld [vmem:[%s0 + $0x18] sm:$0xf]
  %v42 = vld [vmem:[%s0 + $0x1c] sm:$0xf]
  %v43 = vld [vmem:[%s1] sm:$0xff]
  %v44 = vld [vmem:[%s1 + $0x8] sm:$0xff]
  %v45 = vld [vmem:[%s1 + $0x10] sm:$0xff]
  %v46 = vld [vmem:[%s1 + $0x18] sm:$0xff]
  %v47 = vld [vmem:[%s1 + $0x20] sm:$0xff]
  %v48 = vld [vmem:[%s1 + $0x28] sm:$0xff]
  %v49 = vld [vmem:[%s1 + $0x30] sm:$0xff]
  %v50 = vld [vmem:[%s1 + $0x38] sm:$0xff]
  %v51 = vld [vmem:[%s1 + $0x40] sm:$0xff]
  %v52 = vld [vmem:[%s1 + $0x48] sm:$0xff]
  %v53 = vld [vmem:[%s1 + $0x50] sm:$0xff]
  %v54 = vld [vmem:[%s1 + $0x58] sm:$0xff]
  %v55 = vld [vmem:[%s1 + $0x60] sm:$0xff]
  %v56 = vld [vmem:[%s1 + $0x68] sm:$0xff]
  %v57 = vld [vmem:[%s1 + $0x70] sm:$0xff]
  %v58 = vld [vmem:[%s1 + $0x78] sm:$0xff]
  %v67 = vunpack.c.l.b16 %v35
  %v68 = vunpack.c.l.b16 %v36
  %v69 = vunpack.c.l.b16 %v37
  %v70 = vunpack.c.l.b16 %v38
  %v71 = vunpack.c.l.b16 %v39
  %v72 = vunpack.c.l.b16 %v40
  %v73 = vunpack.c.l.b16 %v41
  %v74 = vunpack.c.l.b16 %v42
  %v75 = vpack.c.b16 %v68, %v67
  %v76 = vpack.c.b16 %v70, %v69
  %v77 = vpack.c.b16 %v72, %v71
  %v78 = vpack.c.b16 %v74, %v73
  %v99 = vunpack.c.l.b16 %v43
  %v100 = vunpack.c.h.b16 %v43
  %v101 = vunpack.c.l.b16 %v44
  %v102 = vunpack.c.h.b16 %v44
  %v103 = vunpack.c.l.b16 %v45
  %v104 = vunpack.c.h.b16 %v45
  %v105 = vunpack.c.l.b16 %v46
  %v106 = vunpack.c.h.b16 %v46
  %v107 = vunpack.c.l.b16 %v47
  %v108 = vunpack.c.h.b16 %v47
  %v109 = vunpack.c.l.b16 %v48
  %v110 = vunpack.c.h.b16 %v48
  %v111 = vunpack.c.l.b16 %v49
  %v112 = vunpack.c.h.b16 %v49
  %v113 = vunpack.c.l.b16 %v50
  %v114 = vunpack.c.h.b16 %v50
  %v115 = vunpack.c.l.b16 %v51
  %v116 = vunpack.c.h.b16 %v51
  %v117 = vunpack.c.l.b16 %v52
  %v118 = vunpack.c.h.b16 %v52
  %v119 = vunpack.c.l.b16 %v53
  %v120 = vunpack.c.h.b16 %v53
  %v121 = vunpack.c.l.b16 %v54
  %v122 = vunpack.c.h.b16 %v54
  %v123 = vunpack.c.l.b16 %v55
  %v124 = vunpack.c.h.b16 %v55
  %v125 = vunpack.c.l.b16 %v56
  %v126 = vunpack.c.h.b16 %v56
  %v127 = vunpack.c.l.b16 %v57
  %v128 = vunpack.c.h.b16 %v57
  %v129 = vunpack.c.l.b16 %v58
  %v130 = vunpack.c.h.b16 %v58
  %v131 = vpack.c.b16 %v101, %v99
  %v132 = vpack.c.b16 %v102, %v100
  %v133 = vpack.c.b16 %v105, %v103
  %v134 = vpack.c.b16 %v106, %v104
  %v135 = vpack.c.b16 %v109, %v107
  %v136 = vpack.c.b16 %v110, %v108
  %v137 = vpack.c.b16 %v113, %v111
  %v138 = vpack.c.b16 %v114, %v112
  %v139 = vpack.c.b16 %v117, %v115
  %v140 = vpack.c.b16 %v118, %v116
  %v141 = vpack.c.b16 %v121, %v119
  %v142 = vpack.c.b16 %v122, %v120
  %v143 = vpack.c.b16 %v125, %v123
  %v144 = vpack.c.b16 %v126, %v124
  %v145 = vpack.c.b16 %v129, %v127
  %v146 = vpack.c.b16 %v130, %v128
  %163 = vmatprep.subr.bf16.mxu0 %v132
  %164 = vmatpush1.bf16.msra.mxu0 %v131
  %165 = vmatprep.subr.bf16.mxu0 %v134
  %166 = vmatpush1.bf16.msra.mxu0 %v133
  %167 = vmatprep.subr.bf16.mxu0 %v136
  %168 = vmatpush1.bf16.msra.mxu0 %v135
  %169 = vmatprep.subr.bf16.mxu0 %v138
  %170 = vmatpush1.bf16.msra.mxu0 %v137
  %171 = vmatprep.subr.bf16.mxu0 %v140
  %172 = vmatpush1.bf16.msra.mxu0 %v139
  %173 = vmatprep.subr.bf16.mxu0 %v142
  %174 = vmatpush1.bf16.msra.mxu0 %v141
  %175 = vmatprep.subr.bf16.mxu0 %v144
  %176 = vmatpush1.bf16.msra.mxu0 %v143
  %177 = vmatprep.subr.bf16.mxu0 %v146
  %178 = vmatpush1.bf16.msra.mxu0 %v145
  %179 = vmatprep.subr.bf16.mxu0 0
  %180 = vmatpush1.bf16.msra.mxu0 0
  %181 = vmatprep.subr.bf16.mxu0 0
  %182 = vmatpush1.bf16.msra.mxu0 0
  %183 = vmatprep.subr.bf16.mxu0 0
  %184 = vmatpush1.bf16.msra.mxu0 0
  %185 = vmatprep.subr.bf16.mxu0 0
  %186 = vmatpush1.bf16.msra.mxu0 0
  %187 = vmatprep.subr.bf16.mxu0 0
  %188 = vmatpush1.bf16.msra.mxu0 0
  %189 = vmatprep.subr.bf16.mxu0 0
  %190 = vmatpush1.bf16.msra.mxu0 0
  %191 = vmatprep.subr.bf16.mxu0 0
  %192 = vmatpush1.bf16.msra.mxu0 0
  %193 = vmatprep.subr.bf16.mxu0 0
  %194 = vmatpush1.bf16.msra.mxu0 0
  %195 = vmatprep.mubr.bf16.mxu0 0
  %196 = vmatmul.mubr.bf16.gmra.mrb[0].mxu0 %v75
  %v197 = vpop.f32.mrb[0].mxu0
  %v198 = vadd.f32 0.0, %v197
  %v199 = vpop.f32.mrb[0].mxu0
  %v200 = vadd.f32 0.0, %v199
  %v201 = vpop.f32.mrb[0].mxu0
  %v202 = vadd.f32 0.0, %v201
  %v203 = vpop.f32.mrb[0].mxu0
  %v204 = vadd.f32 0.0, %v203
  %205 = vmatprep.mubr.bf16.mxu0 0
  %206 = vmatmul.mubr.bf16.gmra.mrb[0].mxu0 %v76
  %v207 = vpop.f32.mrb[0].mxu0
  %v208 = vadd.f32 0.0, %v207
  %v209 = vpop.f32.mrb[0].mxu0
  %v210 = vadd.f32 0.0, %v209
  %v211 = vpop.f32.mrb[0].mxu0
  %v212 = vadd.f32 0.0, %v211
  %v213 = vpop.f32.mrb[0].mxu0
  %v214 = vadd.f32 0.0, %v213
  %215 = vmatprep.mubr.bf16.mxu0 0
  %216 = vmatmul.mubr.bf16.gmra.mrb[0].mxu0 %v77
  %v217 = vpop.f32.mrb[0].mxu0
  %v218 = vadd.f32 0.0, %v217
  %v219 = vpop.f32.mrb[0].mxu0
  %v220 = vadd.f32 0.0, %v219
  %v221 = vpop.f32.mrb[0].mxu0
  %v222 = vadd.f32 0.0, %v221
  %v223 = vpop.f32.mrb[0].mxu0
  %v224 = vadd.f32 0.0, %v223
  %225 = vmatprep.mubr.bf16.mxu0 0
  %226 = vmatmul.mubr.bf16.gmra.mrb[0].mxu0 %v78
  %v227 = vpop.f32.mrb[0].mxu0
  %v228 = vadd.f32 0.0, %v227
  %v229 = vpop.f32.mrb[0].mxu0
  %v230 = vadd.f32 0.0, %v229
  %v231 = vpop.f32.mrb[0].mxu0
  %v232 = vadd.f32 0.0, %v231
  %v233 = vpop.f32.mrb[0].mxu0
  %v234 = vadd.f32 0.0, %v233
  %235 = vdwg.mxu0
  %v236 = vld [vmem:[%s3] sm:$0x3]
  %v238 = vlaneseq
  %v239 = vshrl.u32 %v238, 7
  %v240 = vsub.s32 0, %v239
  %v241 = vrot.slane %v236, %v240
  %v242 = vlaneseq
  %v243 = vshrl.u32 %v242, 7
  %v244 = vsub.s32 1, %v243
  %v245 = vrot.slane %v236, %v244
  %v248 = vld [vmem:[%s4] sm:$0x1]
  %v250 = vlaneseq
  %v251 = vshrl.u32 %v250, 7
  %v252 = vsub.s32 0, %v251
  %v253 = vrot.slane %v248, %v252
  %v255 = vld [vmem:[%s2] sm:$0xff]
  %v256 = vld [vmem:[%s2 + $0x8] sm:$0xff]
  %v257 = vld [vmem:[%s2 + $0x10] sm:$0xff]
  %v258 = vld [vmem:[%s2 + $0x18] sm:$0xff]
  %v259 = vld [vmem:[%s2 + $0x20] sm:$0xff]
  %v260 = vld [vmem:[%s2 + $0x28] sm:$0xff]
  %v261 = vld [vmem:[%s2 + $0x30] sm:$0xff]
  %v262 = vld [vmem:[%s2 + $0x38] sm:$0xff]
  %v263 = vld [vmem:[#allocation2] sm:$0xff]
  %v264 = vadd.f32 %v198, %v241
  %v265 = vadd.f32 %v200, %v245
  %v266 = vpack.c.bf16 %v263, %v263
  %v275 = vunpack.c.l.b16 %v255
  %v276 = vunpack.c.h.b16 %v255
  %v277 = vunpack.c.l.b16 %v256
  %v278 = vunpack.c.h.b16 %v256
  %v279 = vunpack.c.l.b16 %v257
  %v280 = vunpack.c.h.b16 %v257
  %v281 = vunpack.c.l.b16 %v258
  %v282 = vunpack.c.h.b16 %v258
  %v283 = vunpack.c.l.b16 %v259
  %v284 = vunpack.c.h.b16 %v259
  %v285 = vunpack.c.l.b16 %v260
  %v286 = vunpack.c.h.b16 %v260
  %v287 = vunpack.c.l.b16 %v261
  %v288 = vunpack.c.h.b16 %v261
  %v289 = vunpack.c.l.b16 %v262
  %v290 = vunpack.c.h.b16 %v262
  %v291 = vpack.c.b16 %v277, %v275
  %v292 = vpack.c.b16 %v278, %v276
  %v293 = vpack.c.b16 %v281, %v279
  %v294 = vpack.c.b16 %v282, %v280
  %v295 = vpack.c.b16 %v285, %v283
  %v296 = vpack.c.b16 %v286, %v284
  %v297 = vpack.c.b16 %v289, %v287
  %v298 = vpack.c.b16 %v290, %v288
  %vm307 = vcmask 523264
  %v309 = vsel %vm307, %v266, 0
  %311 = vmatprep.subr.bf16.mxu0 %v292
  %312 = vmatpush1.bf16.msra.mxu0 %v291
  %313 = vmatprep.subr.bf16.mxu0 %v294
  %314 = vmatpush1.bf16.msra.mxu0 %v293
  %315 = vmatprep.subr.bf16.mxu0 %v296
  %316 = vmatpush1.bf16.msra.mxu0 %v295
  %317 = vmatprep.subr.bf16.mxu0 %v298
  %318 = vmatpush1.bf16.msra.mxu0 %v297
  %319 = vmatprep.subr.bf16.mxu0 0
  %320 = vmatpush1.bf16.msra.mxu0 0
  %321 = vmatprep.subr.bf16.mxu0 0
  %322 = vmatpush1.bf16.msra.mxu0 0
  %323 = vmatprep.subr.bf16.mxu0 0
  %324 = vmatpush1.bf16.msra.mxu0 0
  %325 = vmatprep.subr.bf16.mxu0 0
  %326 = vmatpush1.bf16.msra.mxu0 0
  %327 = vmatprep.subr.bf16.mxu0 0
  %328 = vmatpush1.bf16.msra.mxu0 0
  %329 = vmatprep.subr.bf16.mxu0 0
  %330 = vmatpush1.bf16.msra.mxu0 0
  %331 = vmatprep.subr.bf16.mxu0 0
  %332 = vmatpush1.bf16.msra.mxu0 0
  %333 = vmatprep.subr.bf16.mxu0 0
  %334 = vmatpush1.bf16.msra.mxu0 0
  %335 = vmatprep.subr.bf16.mxu0 0
  %336 = vmatpush1.bf16.msra.mxu0 0
  %337 = vmatprep.subr.bf16.mxu0 0
  %338 = vmatpush1.bf16.msra.mxu0 0
  %339 = vmatprep.subr.bf16.mxu0 0
  %340 = vmatpush1.bf16.msra.mxu0 0
  %341 = vmatprep.subr.bf16.mxu0 0
  %342 = vmatpush1.bf16.msra.mxu0 0
  %343 = vmatprep.mubr.bf16.mxu0 0
  %344 = vmatmul.mubr.bf16.gmra.mrb[0].mxu0 %v309
  %v345 = vpop.f32.mrb[0].mxu0
  %v346 = vadd.f32 0.0, %v345
  %v347 = vpop.f32.mrb[0].mxu0
  %v348 = vadd.f32 0.0, %v347
  %v349 = vpop.f32.mrb[0].mxu0
  %v350 = vpop.f32.mrb[0].mxu0
  %351 = vdwg.mxu0
  %v352 = vadd.f32 %v264, %v346
  %v353 = vxor.u32 %v352, 2147483648
  %v354 = vmul.f32 %v353, 1.442695
  %v355 = vpow.pop %v354
  %v356 = vadd.f32 %v355, 1.0
  %v357 = vrcp.pop %v356
  %v358 = vmul.f32 1.0, %v357
  %v359 = vadd.f32 %v348, %v253
  %v360 = vmul.f32 %v358, %v359
  %v361 = vadd.f32 %v265, %v360
  %v362 = vtanh.pop %v361
  %v363 = vsub.f32 %v263, %v362
  %365 = vrot.lane.b32.xlu0 %v363, 64
  %v366 = vpop.permute.xlu0 %365
  %v368 = vmul.f32 %v358, %v366
  %370 = vrot.lane.b32.xlu0 %v368, 64
  %v371 = vpop.permute.xlu0 %370
  %v373 = vadd.f32 %v362, %v371
  %v374 = vadd.f32 %v202, %v241
  %v375 = vadd.f32 %v204, %v245
  %v376 = vpack.c.bf16 %v373, %v373
  %v378 = vsel %vm307, %v376, 0
  %380 = vmatprep.subr.bf16.mxu0 %v292
  %381 = vmatpush1.bf16.msra.mxu0 %v291
  %382 = vmatprep.subr.bf16.mxu0 %v294
  %383 = vmatpush1.bf16.msra.mxu0 %v293
  %384 = vmatprep.subr.bf16.mxu0 %v296
  %385 = vmatpush1.bf16.msra.mxu0 %v295
  %386 = vmatprep.subr.bf16.mxu0 %v298
  %387 = vmatpush1.bf16.msra.mxu0 %v297
  %388 = vmatprep.subr.bf16.mxu0 0
  %389 = vmatpush1.bf16.msra.mxu0 0
  %390 = vmatprep.subr.bf16.mxu0 0
  %391 = vmatpush1.bf16.msra.mxu0 0
  %392 = vmatprep.subr.bf16.mxu0 0
  %393 = vmatpush1.bf16.msra.mxu0 0
  %394 = vmatprep.subr.bf16.mxu0 0
  %395 = vmatpush1.bf16.msra.mxu0 0
  %396 = vmatprep.subr.bf16.mxu0 0
  %397 = vmatpush1.bf16.msra.mxu0 0
  %398 = vmatprep.subr.bf16.mxu0 0
  %399 = vmatpush1.bf16.msra.mxu0 0
  %400 = vmatprep.subr.bf16.mxu0 0
  %401 = vmatpush1.bf16.msra.mxu0 0
  %402 = vmatprep.subr.bf16.mxu0 0
  %403 = vmatpush1.bf16.msra.mxu0 0
  %404 = vmatprep.subr.bf16.mxu0 0
  %405 = vmatpush1.bf16.msra.mxu0 0
  %406 = vmatprep.subr.bf16.mxu0 0
  %407 = vmatpush1.bf16.msra.mxu0 0
  %408 = vmatprep.subr.bf16.mxu0 0
  %409 = vmatpush1.bf16.msra.mxu0 0
  %410 = vmatprep.subr.bf16.mxu0 0
  %411 = vmatpush1.bf16.msra.mxu0 0
  %412 = vmatprep.mubr.bf16.mxu0 0
  %413 = vmatmul.mubr.bf16.gmra.mrb[0].mxu0 %v378
  %v414 = vpop.f32.mrb[0].mxu0
  %v415 = vadd.f32 0.0, %v414
  %v416 = vpop.f32.mrb[0].mxu0
  %v417 = vadd.f32 0.0, %v416
  %v418 = vpop.f32.mrb[0].mxu0
  %v419 = vpop.f32.mrb[0].mxu0
  %420 = vdwg.mxu0
  %v421 = vadd.f32 %v374, %v415
  %v422 = vxor.u32 %v421, 2147483648
  %v423 = vmul.f32 %v422, 1.442695
  %v424 = vpow.pop %v423
  %v425 = vadd.f32 %v424, 1.0
  %v426 = vrcp.pop %v425
  %v427 = vmul.f32 1.0, %v426
  %v428 = vadd.f32 %v417, %v253
  %v429 = vmul.f32 %v427, %v428
  %v430 = vadd.f32 %v375, %v429
  %v431 = vtanh.pop %v430
  %v432 = vsub.f32 %v373, %v431
  %434 = vrot.lane.b32.xlu0 %v432, 64
  %v435 = vpop.permute.xlu0 %434
  %v437 = vmul.f32 %v427, %v435
  %439 = vrot.lane.b32.xlu0 %v437, 64
  %v440 = vpop.permute.xlu0 %439
  %v442 = vadd.f32 %v431, %v440
  %v443 = vadd.f32 %v208, %v241
  %v444 = vadd.f32 %v210, %v245
  %v445 = vpack.c.bf16 %v442, %v442
  %v447 = vsel %vm307, %v445, 0
  %449 = vmatprep.subr.bf16.mxu0 %v292
  %450 = vmatpush1.bf16.msra.mxu0 %v291
  %451 = vmatprep.subr.bf16.mxu0 %v294
  %452 = vmatpush1.bf16.msra.mxu0 %v293
  %453 = vmatprep.subr.bf16.mxu0 %v296
  %454 = vmatpush1.bf16.msra.mxu0 %v295
  %455 = vmatprep.subr.bf16.mxu0 %v298
  %456 = vmatpush1.bf16.msra.mxu0 %v297
  %457 = vmatprep.subr.bf16.mxu0 0
  %458 = vmatpush1.bf16.msra.mxu0 0
  %459 = vmatprep.subr.bf16.mxu0 0
  %460 = vmatpush1.bf16.msra.mxu0 0
  %461 = vmatprep.subr.bf16.mxu0 0
  %462 = vmatpush1.bf16.msra.mxu0 0
  %463 = vmatprep.subr.bf16.mxu0 0
  %464 = vmatpush1.bf16.msra.mxu0 0
  %465 = vmatprep.subr.bf16.mxu0 0
  %466 = vmatpush1.bf16.msra.mxu0 0
  %467 = vmatprep.subr.bf16.mxu0 0
  %468 = vmatpush1.bf16.msra.mxu0 0
  %469 = vmatprep.subr.bf16.mxu0 0
  %470 = vmatpush1.bf16.msra.mxu0 0
  %471 = vmatprep.subr.bf16.mxu0 0
  %472 = vmatpush1.bf16.msra.mxu0 0
  %473 = vmatprep.subr.bf16.mxu0 0
  %474 = vmatpush1.bf16.msra.mxu0 0
  %475 = vmatprep.subr.bf16.mxu0 0
  %476 = vmatpush1.bf16.msra.mxu0 0
  %477 = vmatprep.subr.bf16.mxu0 0
  %478 = vmatpush1.bf16.msra.mxu0 0
  %479 = vmatprep.subr.bf16.mxu0 0
  %480 = vmatpush1.bf16.msra.mxu0 0
  %481 = vmatprep.mubr.bf16.mxu0 0
  %482 = vmatmul.mubr.bf16.gmra.mrb[0].mxu0 %v447
  %v483 = vpop.f32.mrb[0].mxu0
  %v484 = vadd.f32 0.0, %v483
  %v485 = vpop.f32.mrb[0].mxu0
  %v486 = vadd.f32 0.0, %v485
  %v487 = vpop.f32.mrb[0].mxu0
  %v488 = vpop.f32.mrb[0].mxu0
  %489 = vdwg.mxu0
  %v490 = vadd.f32 %v443, %v484
  %v491 = vxor.u32 %v490, 2147483648
  %v492 = vmul.f32 %v491, 1.442695
  %v493 = vpow.pop %v492
  %v494 = vadd.f32 %v493, 1.0
  %v495 = vrcp.pop %v494
  %v496 = vmul.f32 1.0, %v495
  %v497 = vadd.f32 %v486, %v253
  %v498 = vmul.f32 %v496, %v497
  %v499 = vadd.f32 %v444, %v498
  %v500 = vtanh.pop %v499
  %v501 = vsub.f32 %v442, %v500
  %503 = vrot.lane.b32.xlu0 %v501, 64
  %v504 = vpop.permute.xlu0 %503
  %v506 = vmul.f32 %v496, %v504
  %508 = vrot.lane.b32.xlu0 %v506, 64
  %v509 = vpop.permute.xlu0 %508
  %v511 = vadd.f32 %v500, %v509
  %v512 = vadd.f32 %v212, %v241
  %v513 = vadd.f32 %v214, %v245
  %v514 = vpack.c.bf16 %v511, %v511
  %v516 = vsel %vm307, %v514, 0
  %518 = vmatprep.subr.bf16.mxu0 %v292
  %519 = vmatpush1.bf16.msra.mxu0 %v291
  %520 = vmatprep.subr.bf16.mxu0 %v294
  %521 = vmatpush1.bf16.msra.mxu0 %v293
  %522 = vmatprep.subr.bf16.mxu0 %v296
  %523 = vmatpush1.bf16.msra.mxu0 %v295
  %524 = vmatprep.subr.bf16.mxu0 %v298
  %525 = vmatpush1.bf16.msra.mxu0 %v297
  %526 = vmatprep.subr.bf16.mxu0 0
  %527 = vmatpush1.bf16.msra.mxu0 0
  %528 = vmatprep.subr.bf16.mxu0 0
  %529 = vmatpush1.bf16.msra.mxu0 0
  %530 = vmatprep.subr.bf16.mxu0 0
  %531 = vmatpush1.bf16.msra.mxu0 0
  %532 = vmatprep.subr.bf16.mxu0 0
  %533 = vmatpush1.bf16.msra.mxu0 0
  %534 = vmatprep.subr.bf16.mxu0 0
  %535 = vmatpush1.bf16.msra.mxu0 0
  %536 = vmatprep.subr.bf16.mxu0 0
  %537 = vmatpush1.bf16.msra.mxu0 0
  %538 = vmatprep.subr.bf16.mxu0 0
  %539 = vmatpush1.bf16.msra.mxu0 0
  %540 = vmatprep.subr.bf16.mxu0 0
  %541 = vmatpush1.bf16.msra.mxu0 0
  %542 = vmatprep.subr.bf16.mxu0 0
  %543 = vmatpush1.bf16.msra.mxu0 0
  %544 = vmatprep.subr.bf16.mxu0 0
  %545 = vmatpush1.bf16.msra.mxu0 0
  %546 = vmatprep.subr.bf16.mxu0 0
  %547 = vmatpush1.bf16.msra.mxu0 0
  %548 = vmatprep.subr.bf16.mxu0 0
  %549 = vmatpush1.bf16.msra.mxu0 0
  %550 = vmatprep.mubr.bf16.mxu0 0
  %551 = vmatmul.mubr.bf16.gmra.mrb[0].mxu0 %v516
  %v552 = vpop.f32.mrb[0].mxu0
  %v553 = vadd.f32 0.0, %v552
  %v554 = vpop.f32.mrb[0].mxu0
  %v555 = vadd.f32 0.0, %v554
  %v556 = vpop.f32.mrb[0].mxu0
  %v557 = vpop.f32.mrb[0].mxu0
  %558 = vdwg.mxu0
  %v559 = vadd.f32 %v512, %v553
  %v560 = vxor.u32 %v559, 2147483648
  %v561 = vmul.f32 %v560, 1.442695
  %v562 = vpow.pop %v561
  %v563 = vadd.f32 %v562, 1.0
  %v564 = vrcp.pop %v563
  %v565 = vmul.f32 1.0, %v564
  %v566 = vadd.f32 %v555, %v253
  %v567 = vmul.f32 %v565, %v566
  %v568 = vadd.f32 %v513, %v567
  %v569 = vtanh.pop %v568
  %v570 = vsub.f32 %v511, %v569
  %572 = vrot.lane.b32.xlu0 %v570, 64
  %v573 = vpop.permute.xlu0 %572
  %v575 = vmul.f32 %v565, %v573
  %577 = vrot.lane.b32.xlu0 %v575, 64
  %v578 = vpop.permute.xlu0 %577
  %v580 = vadd.f32 %v569, %v578
  %v581 = vadd.f32 %v218, %v241
  %v582 = vadd.f32 %v220, %v245
  %v583 = vpack.c.bf16 %v580, %v580
  %v585 = vsel %vm307, %v583, 0
  %587 = vmatprep.subr.bf16.mxu0 %v292
  %588 = vmatpush1.bf16.msra.mxu0 %v291
  %589 = vmatprep.subr.bf16.mxu0 %v294
  %590 = vmatpush1.bf16.msra.mxu0 %v293
  %591 = vmatprep.subr.bf16.mxu0 %v296
  %592 = vmatpush1.bf16.msra.mxu0 %v295
  %593 = vmatprep.subr.bf16.mxu0 %v298
  %594 = vmatpush1.bf16.msra.mxu0 %v297
  %595 = vmatprep.subr.bf16.mxu0 0
  %596 = vmatpush1.bf16.msra.mxu0 0
  %597 = vmatprep.subr.bf16.mxu0 0
  %598 = vmatpush1.bf16.msra.mxu0 0
  %599 = vmatprep.subr.bf16.mxu0 0
  %600 = vmatpush1.bf16.msra.mxu0 0
  %601 = vmatprep.subr.bf16.mxu0 0
  %602 = vmatpush1.bf16.msra.mxu0 0
  %603 = vmatprep.subr.bf16.mxu0 0
  %604 = vmatpush1.bf16.msra.mxu0 0
  %605 = vmatprep.subr.bf16.mxu0 0
  %606 = vmatpush1.bf16.msra.mxu0 0
  %607 = vmatprep.subr.bf16.mxu0 0
  %608 = vmatpush1.bf16.msra.mxu0 0
  %609 = vmatprep.subr.bf16.mxu0 0
  %610 = vmatpush1.bf16.msra.mxu0 0
  %611 = vmatprep.subr.bf16.mxu0 0
  %612 = vmatpush1.bf16.msra.mxu0 0
  %613 = vmatprep.subr.bf16.mxu0 0
  %614 = vmatpush1.bf16.msra.mxu0 0
  %615 = vmatprep.subr.bf16.mxu0 0
  %616 = vmatpush1.bf16.msra.mxu0 0
  %617 = vmatprep.subr.bf16.mxu0 0
  %618 = vmatpush1.bf16.msra.mxu0 0
  %619 = vmatprep.mubr.bf16.mxu0 0
  %620 = vmatmul.mubr.bf16.gmra.mrb[0].mxu0 %v585
  %v621 = vpop.f32.mrb[0].mxu0
  %v622 = vadd.f32 0.0, %v621
  %v623 = vpop.f32.mrb[0].mxu0
  %v624 = vadd.f32 0.0, %v623
  %v625 = vpop.f32.mrb[0].mxu0
  %v626 = vpop.f32.mrb[0].mxu0
  %627 = vdwg.mxu0
  %v628 = vadd.f32 %v581, %v622
  %v629 = vxor.u32 %v628, 2147483648
  %v630 = vmul.f32 %v629, 1.442695
  %v631 = vpow.pop %v630
  %v632 = vadd.f32 %v631, 1.0
  %v633 = vrcp.pop %v632
  %v634 = vmul.f32 1.0, %v633
  %v635 = vadd.f32 %v624, %v253
  %v636 = vmul.f32 %v634, %v635
  %v637 = vadd.f32 %v582, %v636
  %v638 = vtanh.pop %v637
  %v639 = vsub.f32 %v580, %v638
  %641 = vrot.lane.b32.xlu0 %v639, 64
  %v642 = vpop.permute.xlu0 %641
  %v644 = vmul.f32 %v634, %v642
  %646 = vrot.lane.b32.xlu0 %v644, 64
  %v647 = vpop.permute.xlu0 %646
  %v649 = vadd.f32 %v638, %v647
  %v650 = vadd.f32 %v222, %v241
  %v651 = vadd.f32 %v224, %v245
  %v652 = vpack.c.bf16 %v649, %v649
  %v654 = vsel %vm307, %v652, 0
  %656 = vmatprep.subr.bf16.mxu0 %v292
  %657 = vmatpush1.bf16.msra.mxu0 %v291
  %658 = vmatprep.subr.bf16.mxu0 %v294
  %659 = vmatpush1.bf16.msra.mxu0 %v293
  %660 = vmatprep.subr.bf16.mxu0 %v296
  %661 = vmatpush1.bf16.msra.mxu0 %v295
  %662 = vmatprep.subr.bf16.mxu0 %v298
  %663 = vmatpush1.bf16.msra.mxu0 %v297
  %664 = vmatprep.subr.bf16.mxu0 0
  %665 = vmatpush1.bf16.msra.mxu0 0
  %666 = vmatprep.subr.bf16.mxu0 0
  %667 = vmatpush1.bf16.msra.mxu0 0
  %668 = vmatprep.subr.bf16.mxu0 0
  %669 = vmatpush1.bf16.msra.mxu0 0
  %670 = vmatprep.subr.bf16.mxu0 0
  %671 = vmatpush1.bf16.msra.mxu0 0
  %672 = vmatprep.subr.bf16.mxu0 0
  %673 = vmatpush1.bf16.msra.mxu0 0
  %674 = vmatprep.subr.bf16.mxu0 0
  %675 = vmatpush1.bf16.msra.mxu0 0
  %676 = vmatprep.subr.bf16.mxu0 0
  %677 = vmatpush1.bf16.msra.mxu0 0
  %678 = vmatprep.subr.bf16.mxu0 0
  %679 = vmatpush1.bf16.msra.mxu0 0
  %680 = vmatprep.subr.bf16.mxu0 0
  %681 = vmatpush1.bf16.msra.mxu0 0
  %682 = vmatprep.subr.bf16.mxu0 0
  %683 = vmatpush1.bf16.msra.mxu0 0
  %684 = vmatprep.subr.bf16.mxu0 0
  %685 = vmatpush1.bf16.msra.mxu0 0
  %686 = vmatprep.subr.bf16.mxu0 0
  %687 = vmatpush1.bf16.msra.mxu0 0
  %688 = vmatprep.mubr.bf16.mxu0 0
  %689 = vmatmul.mubr.bf16.gmra.mrb[0].mxu0 %v654
  %v690 = vpop.f32.mrb[0].mxu0
  %v691 = vadd.f32 0.0, %v690
  %v692 = vpop.f32.mrb[0].mxu0
  %v693 = vadd.f32 0.0, %v692
  %v694 = vpop.f32.mrb[0].mxu0
  %v695 = vpop.f32.mrb[0].mxu0
  %696 = vdwg.mxu0
  %v697 = vadd.f32 %v650, %v691
  %v698 = vxor.u32 %v697, 2147483648
  %v699 = vmul.f32 %v698, 1.442695
  %v700 = vpow.pop %v699
  %v701 = vadd.f32 %v700, 1.0
  %v702 = vrcp.pop %v701
  %v703 = vmul.f32 1.0, %v702
  %v704 = vadd.f32 %v693, %v253
  %v705 = vmul.f32 %v703, %v704
  %v706 = vadd.f32 %v651, %v705
  %v707 = vtanh.pop %v706
  %v708 = vsub.f32 %v649, %v707
  %710 = vrot.lane.b32.xlu0 %v708, 64
  %v711 = vpop.permute.xlu0 %710
  %v713 = vmul.f32 %v703, %v711
  %715 = vrot.lane.b32.xlu0 %v713, 64
  %v716 = vpop.permute.xlu0 %715
  %v718 = vadd.f32 %v707, %v716
  %v719 = vadd.f32 %v228, %v241
  %v720 = vadd.f32 %v230, %v245
  %v721 = vpack.c.bf16 %v718, %v718
  %v723 = vsel %vm307, %v721, 0
  %725 = vmatprep.subr.bf16.mxu0 %v292
  %726 = vmatpush1.bf16.msra.mxu0 %v291
  %727 = vmatprep.subr.bf16.mxu0 %v294
  %728 = vmatpush1.bf16.msra.mxu0 %v293
  %729 = vmatprep.subr.bf16.mxu0 %v296
  %730 = vmatpush1.bf16.msra.mxu0 %v295
  %731 = vmatprep.subr.bf16.mxu0 %v298
  %732 = vmatpush1.bf16.msra.mxu0 %v297
  %733 = vmatprep.subr.bf16.mxu0 0
  %734 = vmatpush1.bf16.msra.mxu0 0
  %735 = vmatprep.subr.bf16.mxu0 0
  %736 = vmatpush1.bf16.msra.mxu0 0
  %737 = vmatprep.subr.bf16.mxu0 0
  %738 = vmatpush1.bf16.msra.mxu0 0
  %739 = vmatprep.subr.bf16.mxu0 0
  %740 = vmatpush1.bf16.msra.mxu0 0
  %741 = vmatprep.subr.bf16.mxu0 0
  %742 = vmatpush1.bf16.msra.mxu0 0
  %743 = vmatprep.subr.bf16.mxu0 0
  %744 = vmatpush1.bf16.msra.mxu0 0
  %745 = vmatprep.subr.bf16.mxu0 0
  %746 = vmatpush1.bf16.msra.mxu0 0
  %747 = vmatprep.subr.bf16.mxu0 0
  %748 = vmatpush1.bf16.msra.mxu0 0
  %749 = vmatprep.subr.bf16.mxu0 0
  %750 = vmatpush1.bf16.msra.mxu0 0
  %751 = vmatprep.subr.bf16.mxu0 0
  %752 = vmatpush1.bf16.msra.mxu0 0
  %753 = vmatprep.subr.bf16.mxu0 0
  %754 = vmatpush1.bf16.msra.mxu0 0
  %755 = vmatprep.subr.bf16.mxu0 0
  %756 = vmatpush1.bf16.msra.mxu0 0
  %757 = vmatprep.mubr.bf16.mxu0 0
  %758 = vmatmul.mubr.bf16.gmra.mrb[0].mxu0 %v723
  %v759 = vpop.f32.mrb[0].mxu0
  %v760 = vadd.f32 0.0, %v759
  %v761 = vpop.f32.mrb[0].mxu0
  %v762 = vadd.f32 0.0, %v761
  %v763 = vpop.f32.mrb[0].mxu0
  %v764 = vpop.f32.mrb[0].mxu0
  %765 = vdwg.mxu0
  %v766 = vadd.f32 %v719, %v760
  %v767 = vxor.u32 %v766, 2147483648
  %v768 = vmul.f32 %v767, 1.442695
  %v769 = vpow.pop %v768
  %v770 = vadd.f32 %v769, 1.0
  %v771 = vrcp.pop %v770
  %v772 = vmul.f32 1.0, %v771
  %v773 = vadd.f32 %v762, %v253
  %v774 = vmul.f32 %v772, %v773
  %v775 = vadd.f32 %v720, %v774
  %v776 = vtanh.pop %v775
  %v777 = vsub.f32 %v718, %v776
  %779 = vrot.lane.b32.xlu0 %v777, 64
  %v780 = vpop.permute.xlu0 %779
  %v782 = vmul.f32 %v772, %v780
  %784 = vrot.lane.b32.xlu0 %v782, 64
  %v785 = vpop.permute.xlu0 %784
  %v787 = vadd.f32 %v776, %v785
  %v788 = vadd.f32 %v232, %v241
  %v789 = vadd.f32 %v234, %v245
  %v790 = vpack.c.bf16 %v787, %v787
  %v792 = vsel %vm307, %v790, 0
  %794 = vmatprep.subr.bf16.mxu0 %v292
  %795 = vmatpush1.bf16.msra.mxu0 %v291
  %796 = vmatprep.subr.bf16.mxu0 %v294
  %797 = vmatpush1.bf16.msra.mxu0 %v293
  %798 = vmatprep.subr.bf16.mxu0 %v296
  %799 = vmatpush1.bf16.msra.mxu0 %v295
  %800 = vmatprep.subr.bf16.mxu0 %v298
  %801 = vmatpush1.bf16.msra.mxu0 %v297
  %802 = vmatprep.subr.bf16.mxu0 0
  %803 = vmatpush1.bf16.msra.mxu0 0
  %804 = vmatprep.subr.bf16.mxu0 0
  %805 = vmatpush1.bf16.msra.mxu0 0
  %806 = vmatprep.subr.bf16.mxu0 0
  %807 = vmatpush1.bf16.msra.mxu0 0
  %808 = vmatprep.subr.bf16.mxu0 0
  %809 = vmatpush1.bf16.msra.mxu0 0
  %810 = vmatprep.subr.bf16.mxu0 0
  %811 = vmatpush1.bf16.msra.mxu0 0
  %812 = vmatprep.subr.bf16.mxu0 0
  %813 = vmatpush1.bf16.msra.mxu0 0
  %814 = vmatprep.subr.bf16.mxu0 0
  %815 = vmatpush1.bf16.msra.mxu0 0
  %816 = vmatprep.subr.bf16.mxu0 0
  %817 = vmatpush1.bf16.msra.mxu0 0
  %818 = vmatprep.subr.bf16.mxu0 0
  %819 = vmatpush1.bf16.msra.mxu0 0
  %820 = vmatprep.subr.bf16.mxu0 0
  %821 = vmatpush1.bf16.msra.mxu0 0
  %822 = vmatprep.subr.bf16.mxu0 0
  %823 = vmatpush1.bf16.msra.mxu0 0
  %824 = vmatprep.subr.bf16.mxu0 0
  %825 = vmatpush1.bf16.msra.mxu0 0
  %826 = vmatprep.mubr.bf16.mxu0 0
  %827 = vmatmul.mubr.bf16.gmra.mrb[0].mxu0 %v792
  %v828 = vpop.f32.mrb[0].mxu0
  %v829 = vadd.f32 0.0, %v828
  %v830 = vpop.f32.mrb[0].mxu0
  %v831 = vadd.f32 0.0, %v830
  %v832 = vpop.f32.mrb[0].mxu0
  %v833 = vpop.f32.mrb[0].mxu0
  %834 = vdwg.mxu0
  %v835 = vadd.f32 %v788, %v829
  %v836 = vxor.u32 %v835, 2147483648
  %v837 = vmul.f32 %v836, 1.442695
  %v838 = vpow.pop %v837
  %v839 = vadd.f32 %v838, 1.0
  %v840 = vrcp.pop %v839
  %v841 = vmul.f32 1.0, %v840
  %v842 = vadd.f32 %v831, %v253
  %v843 = vmul.f32 %v841, %v842
  %v844 = vadd.f32 %v789, %v843
  %v845 = vtanh.pop %v844
  %v846 = vsub.f32 %v787, %v845
  %848 = vrot.lane.b32.xlu0 %v846, 64
  %v849 = vpop.permute.xlu0 %848
  %v851 = vmul.f32 %v841, %v849
  %853 = vrot.lane.b32.xlu0 %v851, 64
  %v854 = vpop.permute.xlu0 %853
  %v856 = vadd.f32 %v845, %v854
  %857 = vst.msk [vmem:[#allocation2] sm:$0xff] %vm307, %v856
  // Predicated region
  $region34: #{tpu_custom_call.1} parent=0 // pred_check
    %p858 = pneg %p29
  $region35: #{tpu_custom_call.1} parent=0 // pred_check_branch
    %860 = sbr.rel (%p858) target = $region37
  $region36: #{tpu_custom_call.1} parent=0 // pred_region
    %v861 = vld [vmem:[#allocation2] sm:$0xff]
    %v862 = vld [vmem:[%s5] sm:$0x1]
    %v864 = vlaneseq
    %v865 = vshrl.u32 %v864, 7
    %v866 = vsub.s32 0, %v865
    %v867 = vrot.slane %v862, %v866
    %v869 = vmul.f32 %v861, %v867
    %v870 = vsel %vm307, %v869, 0.0
    %871 = vadd.xlane.f32.xlu0 %v870
    %v872 = vpop.xlane.xlu0 %871
    %v873 = vld [vmem:[#allocation3] sm:$0x1]
    %v875 = vlaneseq
    %v876 = vshrl.u32 %v875, 7
    %v877 = vsub.s32 0, %v876
    %v878 = vrot.slane %v873, %v877
    %v880 = vadd.f32 %v872, %v878
    %v881 = vxor.u32 %v880, 2147483648
    %v882 = vmul.f32 %v881, 1.442695
    %v883 = vpow.pop %v882
    %v884 = vadd.f32 %v883, 1.0
    %v885 = vrcp.pop %v884
    %v886 = vmul.f32 1.0, %v885
    %vm887 = vcmask 7168
    %888 = vst.msk [vmem:[%s7] sm:$0xff] %vm887, %v886
  $region37: #{tpu_custom_call.1} parent=0 // pred_fallthru
    _
  // Predicated region
  $region38: #{tpu_custom_call.1} parent=0 // pred_check
    _
  $region39: #{tpu_custom_call.1} parent=0 // pred_check_branch
    %890 = sbr.rel (0) target = $region41
  $region40: #{tpu_custom_call.1} parent=0 // pred_region
    _
  $region41: #{tpu_custom_call.1} parent=0 // pred_fallthru
    _
  // Predicated region
  $region42: #{tpu_custom_call.1} parent=0 // pred_check
    _
  $region43: #{tpu_custom_call.1} parent=0 // pred_check_branch
    %892 = sbr.rel (0) target = $region45
  $region44: #{tpu_custom_call.1} parent=0 // pred_region
    _
  $region45: #{tpu_custom_call.1} parent=0 // pred_fallthru
    _

</llo_original>
